<compile_context>
chip_gen: v7x
topology: tpu7x:2x2x1
jax: 0.10.0
libtpu: 0.0.40
codegen_flags: <defaults>
</compile_context>

<pallas_src>
import math

import jax
import jax.numpy as jnp
from jax import lax
from jax.experimental import pallas as pl
from jax.experimental.pallas import tpu as pltpu


def _critic_kernel(x_ref, w1_ref, b1_ref, w2_ref, b2_ref, w3_ref, b3_ref, o_ref):
    """One batch tile of the fused Critic MLP.

    Shapes (bt = batch_tile, H = 128, D = n_observations):
      x_ref  : [bt, D]  f32    activations, PyTorch layout (batch on sublanes)
      w1_ref : [H, D]   bf16   layer1 weight (PyTorch [out, in] layout)
      b1_ref : [H, 1]   f32
      w2_ref : [H, H]   bf16
      b2_ref : [H, 1]   f32
      w3_ref : [H, 1]   f32    layer3 weight as a column
      b3_ref : [1, 1]   f32    scalar in SMEM
      o_ref  : [1, bt]  f32    lane-dense output row
    """
    # Cast to the MXU compute dtype in VMEM (VPU) -- no wrapper-side HBM pass.
    x = x_ref[...].astype(w1_ref.dtype)                                # [bt, D]

    # layer1 + ReLU: contract on D of both operands (w1 @ x^T), so the operand
    # transpose happens inside the kernel and h1 lands as [H, bt] with the
    # batch on the lane axis.  bf16 MXU inputs, f32 accumulation.
    h1 = lax.dot_general(w1_ref[...], x,
                         dimension_numbers=(((1,), (1,)), ((), ())),
                         preferred_element_type=jnp.float32)           # [H, bt]
    # Fused epilogue: bias + ReLU + cast for layer2 in one pass (single
    # materialization of h1 -> fewer full-tile vector stores on v5e).
    h1 = jnp.maximum(h1 + b1_ref[...], 0.0).astype(w2_ref.dtype)       # [H, bt]

    # layer2 + ReLU.
    h2 = jnp.dot(w2_ref[...], h1, preferred_element_type=jnp.float32)
    h2 = jnp.maximum(h2 + b2_ref[...], 0.0)                            # [H, bt] f32

    # layer3 (out_features = 1): VPU broadcast-multiply + sublane (XLU) reduce
    # instead of an N=1 MXU matmul; result is already a lane-dense [1, bt] row.
    v = jnp.sum(h2 * w3_ref[...], axis=0, keepdims=True) + b3_ref[0, 0]
    o_ref[...] = v.astype(o_ref.dtype)


def _round_up(v, m):
    return ((v + m - 1) // m) * m


def _choose_batch_tile(B, max_tile=2048):
    """Pick (batch_tile, num_tiles).

    * B <= 512: one full block (block == array, so no (8,128) divisibility
      constraint, no padding, no per-grid-step overhead).
    * B  > 512: tiles of up to `max_tile` lanes, multiple of 128, chosen so
      there are >= 2 grid steps (v7x megacore sharding of the 'parallel' axis).
      max_tile=2048 keeps the [128, bt] f32 intermediates (~1 MiB each) far
      below v5e's 16 MiB scoped-VMEM default.
    """
    if B <= 512:
        return B, 1
    batch_tile = min(max_tile, _round_up(pl.cdiv(B, 2), 128))
    num_tiles = pl.cdiv(B, batch_tile)
    return batch_tile, num_tiles


def critic_forward(x, params, *, compute_dtype=jnp.bfloat16, max_batch_tile=2048):
    """Fused Pallas forward pass of the Critic.

    x:      [B, n_observations] float32
    params: PyTorch-layout params: w1 [128, n_obs], b1 [128], w2 [128, 128],
            b2 [128], w3 [1, 128], b3 [1].
    compute_dtype: MXU input dtype for x/w1/w2 (bf16 default; use jnp.float32
            for exact fp32-PyTorch parity at lower MXU rate).
    Returns [B, 1] float32.
    """
    B, n_obs = x.shape
    hidden = params["w1"].shape[0]

    batch_tile, num_tiles = _choose_batch_tile(B, max_batch_tile)
    B_pad = num_tiles * batch_tile

    # x is fed as-is (original dtype, untransposed); the cast + transpose live
    # inside the kernel.  Pad (f32, single XLA op) only when the tile doesn't
    # divide B; padded lanes carry relu(b)-garbage that is sliced off below.
    x_in = x if B_pad == B else jnp.pad(x, ((0, B_pad - B), (0, 0)))

    w1 = params["w1"].astype(compute_dtype)                    # [H, n_obs]
    w2 = params["w2"].astype(compute_dtype)                    # [H, H]
    b1 = params["b1"].astype(jnp.float32).reshape(hidden, 1)
    b2 = params["b2"].astype(jnp.float32).reshape(hidden, 1)
    w3 = params["w3"].astype(jnp.float32).reshape(hidden, 1)   # column
    b3 = params["b3"].astype(jnp.float32).reshape(1, 1)

    # Advisory cost estimate so XLA schedules the surrounding ops well.
    flops = 2 * B_pad * (hidden * n_obs + hidden * hidden + hidden)
    bytes_accessed = int(
        B_pad * n_obs * x.dtype.itemsize                       # x read
        + B_pad * 4                                            # output row write
        + (hidden * n_obs + hidden * hidden) * jnp.dtype(compute_dtype).itemsize
        + (3 * hidden + 1) * 4                                 # b1, b2, w3, b3
    )

    out_row = pl.pallas_call(
        _critic_kernel,
        out_shape=jax.ShapeDtypeStruct((1, B_pad), jnp.float32),
        grid_spec=pltpu.PrefetchScalarGridSpec(
            num_scalar_prefetch=0,
            grid=(num_tiles,),
            in_specs=[
                # activations: tiled over the batch (sublane) axis
                pl.BlockSpec((batch_tile, n_obs), lambda i: (i, 0)),
                # weights / biases: resident, same block every grid step
                pl.BlockSpec((hidden, n_obs), lambda i: (0, 0)),
                pl.BlockSpec((hidden, 1), lambda i: (0, 0)),
                pl.BlockSpec((hidden, hidden), lambda i: (0, 0)),
                pl.BlockSpec((hidden, 1), lambda i: (0, 0)),
                pl.BlockSpec((hidden, 1), lambda i: (0, 0)),
                # b3 as an SMEM scalar (no padded (1,1) VMEM tile / DMA pair)
                pl.BlockSpec(memory_space=pltpu.MemorySpace.SMEM),
            ],
            out_specs=pl.BlockSpec((1, batch_tile), lambda i: (0, i)),
        ),
        compiler_params=pltpu.CompilerParams(
            dimension_semantics=("parallel",),
        ),
        cost_estimate=pl.CostEstimate(
            flops=flops, transcendentals=0, bytes_accessed=bytes_accessed),
    )(x_in, w1, b1, w2, b2, w3, b3)

    return out_row[0, :B].reshape(B, 1)


def init_critic_params(key, n_observations, hidden=128):
    """PyTorch nn.Linear-style init: U(-1/sqrt(fan_in), 1/sqrt(fan_in)),
    weights stored in PyTorch [out_features, in_features] layout."""
    def linear(k, fan_in, fan_out):
        kw, kb = jax.random.split(k)
        bound = 1.0 / math.sqrt(fan_in)
        w = jax.random.uniform(kw, (fan_out, fan_in), jnp.float32, -bound, bound)
        b = jax.random.uniform(kb, (fan_out,), jnp.float32, -bound, bound)
        return w, b

    k1, k2, k3 = jax.random.split(key, 3)
    w1, b1 = linear(k1, n_observations, hidden)
    w2, b2 = linear(k2, hidden, hidden)
    w3, b3 = linear(k3, hidden, 1)
    return {"w1": w1, "b1": b1, "w2": w2, "b2": b2, "w3": w3, "b3": b3}


def critic_reference(x, p, compute_dtype=jnp.bfloat16):
    """Pure-JAX reference with the same bf16 input quantization as the kernel."""
    q = lambda a: a.astype(compute_dtype).astype(jnp.float32)
    h1 = jnp.maximum(q(x) @ q(p["w1"]).T + p["b1"], 0.0)
    h2 = jnp.maximum(q(h1) @ q(p["w2"]).T + p["b2"], 0.0)
    return h2 @ p["w3"].T + p["b3"]


if __name__ == "__main__":
    key = jax.random.PRNGKey(0)
    k_param, k_x, k_x2 = jax.random.split(key, 3)

    n_observations = 16
    n_actions = 4  # unused by Critic.forward (kept for parity with the module signature)
    params = init_critic_params(k_param, n_observations)

    # Small RL-style batch: single-block path (no padding, 1 grid step).
    batch = 8
    x = jax.random.normal(k_x, (batch, n_observations), jnp.float32)
    out = jax.block_until_ready(critic_forward(x, params))
    ref = critic_reference(x, params)
    assert out.shape == (batch, 1)
    assert jnp.allclose(out, ref, atol=1e-3, rtol=1e-3), "Pallas output mismatch (small batch)"

    # Larger, non-divisible batch: exercises the multi-tile + padding path.
    batch2 = 600
    x2 = jax.random.normal(k_x2, (batch2, n_observations), jnp.float32)
    out2 = jax.block_until_ready(critic_forward(x2, params))
    ref2 = critic_reference(x2, params)
    assert out2.shape == (batch2, 1)
    assert jnp.allclose(out2, ref2, atol=1e-3, rtol=1e-3), "Pallas output mismatch (tiled batch)"

    print("KERNEL_OK")
</pallas_src>

<mosaic_0001>
module attributes {stable_mosaic.version = 11 : i64} {
  func.func @_critic_kernel(%arg0: i32, %arg1: memref<8x16xf32, #tpu.memory_space<vmem>>, %arg2: memref<128x16xbf16, #tpu.memory_space<vmem>>, %arg3: memref<128x1xf32, #tpu.memory_space<vmem>>, %arg4: memref<128x128xbf16, #tpu.memory_space<vmem>>, %arg5: memref<128x1xf32, #tpu.memory_space<vmem>>, %arg6: memref<128x1xf32, #tpu.memory_space<vmem>>, %arg7: memref<1x1xf32, #tpu.memory_space<smem>>, %arg8: memref<1x8xf32, #tpu.memory_space<vmem>>) attributes {dimension_semantics = [#tpu.dimension_semantics<parallel>], iteration_bounds = array<i64: 1>, scalar_prefetch = 0 : i64, scratch_operands = 0 : i64, tpu.core_type = #tpu.core_type<tc>, window_params = [{transform_indices = @transform_0, window_bounds = array<i64: 8, 16>}, {pipeline_mode = #tpu.pipeline_mode<synchronous>, transform_indices = @transform_1, window_bounds = array<i64: 128, 16>}, {pipeline_mode = #tpu.pipeline_mode<synchronous>, transform_indices = @transform_2, window_bounds = array<i64: 128, 1>}, {pipeline_mode = #tpu.pipeline_mode<synchronous>, transform_indices = @transform_3, window_bounds = array<i64: 128, 128>}, {pipeline_mode = #tpu.pipeline_mode<synchronous>, transform_indices = @transform_4, window_bounds = array<i64: 128, 1>}, {pipeline_mode = #tpu.pipeline_mode<synchronous>, transform_indices = @transform_5, window_bounds = array<i64: 128, 1>}, {transform_indices = @transform_6, window_bounds = array<i64: 1, 1>}, {transform_indices = @transform_7, window_bounds = array<i64: 1, 8>}]} {
    %c0 = arith.constant 0 : index
    %c0_0 = arith.constant 0 : index
    %0 = vector.load %arg1[%c0, %c0_0] : memref<8x16xf32, #tpu.memory_space<vmem>>, vector<8x16xf32>
    %1 = arith.truncf %0 : vector<8x16xf32> to vector<8x16xbf16>
    %c0_1 = arith.constant 0 : index
    %c0_2 = arith.constant 0 : index
    %2 = vector.load %arg2[%c0_1, %c0_2] : memref<128x16xbf16, #tpu.memory_space<vmem>>, vector<128x16xbf16>
    %cst = arith.constant dense<0.000000e+00> : vector<128x8xf32>
    %3 = tpu.matmul %2, %1, %cst {dimension_numbers = #tpu.dot_dimension_numbers<[1], [1], [0], [0], [0, 0, 1, 0], [], []>} : vector<128x16xbf16>, vector<8x16xbf16>, vector<128x8xf32> -> vector<128x8xf32>
    %c0_3 = arith.constant 0 : index
    %c0_4 = arith.constant 0 : index
    %4 = vector.load %arg3[%c0_3, %c0_4] : memref<128x1xf32, #tpu.memory_space<vmem>>, vector<128x1xf32>
    %5 = vector.broadcast %4 : vector<128x1xf32> to vector<128x8xf32>
    %6 = arith.addf %3, %5 : vector<128x8xf32>
    %cst_5 = arith.constant 0.000000e+00 : f32
    %7 = vector.broadcast %cst_5 : f32 to vector<128x8xf32>
    %8 = arith.maximumf %6, %7 : vector<128x8xf32>
    %9 = arith.truncf %8 : vector<128x8xf32> to vector<128x8xbf16>
    %c0_6 = arith.constant 0 : index
    %c0_7 = arith.constant 0 : index
    %10 = vector.load %arg4[%c0_6, %c0_7] : memref<128x128xbf16, #tpu.memory_space<vmem>>, vector<128x128xbf16>
    %cst_8 = arith.constant dense<0.000000e+00> : vector<128x8xf32>
    %11 = tpu.matmul %10, %9, %cst_8 {dimension_numbers = #tpu.dot_dimension_numbers<[1], [0], [0], [1], [0, 0, 1, 1], [], []>} : vector<128x128xbf16>, vector<128x8xbf16>, vector<128x8xf32> -> vector<128x8xf32>
    %c0_9 = arith.constant 0 : index
    %c0_10 = arith.constant 0 : index
    %12 = vector.load %arg5[%c0_9, %c0_10] : memref<128x1xf32, #tpu.memory_space<vmem>>, vector<128x1xf32>
    %13 = vector.broadcast %12 : vector<128x1xf32> to vector<128x8xf32>
    %14 = arith.addf %11, %13 : vector<128x8xf32>
    %cst_11 = arith.constant 0.000000e+00 : f32
    %15 = vector.broadcast %cst_11 : f32 to vector<128x8xf32>
    %16 = arith.maximumf %14, %15 : vector<128x8xf32>
    %c0_12 = arith.constant 0 : index
    %c0_13 = arith.constant 0 : index
    %17 = vector.load %arg6[%c0_12, %c0_13] : memref<128x1xf32, #tpu.memory_space<vmem>>, vector<128x1xf32>
    %18 = vector.broadcast %17 : vector<128x1xf32> to vector<128x8xf32>
    %19 = arith.mulf %16, %18 : vector<128x8xf32>
    %cst_14 = arith.constant dense<0.000000e+00> : vector<8xf32>
    %20 = vector.multi_reduction <add>, %19, %cst_14 [0] : vector<128x8xf32> to vector<8xf32>
    %21 = vector.shape_cast %20 : vector<8xf32> to vector<1x8xf32>
    %c0_15 = arith.constant 0 : index
    %c0_16 = arith.constant 0 : index
    %22 = memref.load %arg7[%c0_15, %c0_16] : memref<1x1xf32, #tpu.memory_space<smem>>
    %23 = vector.broadcast %22 : f32 to vector<1x8xf32>
    %24 = arith.addf %21, %23 : vector<1x8xf32>
    %c0_17 = arith.constant 0 : index
    %c0_18 = arith.constant 0 : index
    %25 = vector.load %arg8[%c0_17, %c0_18] : memref<1x8xf32, #tpu.memory_space<vmem>>, vector<1x8xf32>
    tpu.vector_store %arg8[%c0_17, %c0_18], %24 {strides = array<i32>} : memref<1x8xf32, #tpu.memory_space<vmem>>, vector<1x8xf32>,
    return
  }
  func.func @transform_0(%arg0: i32) -> (i32, i32) {
    %c0_i32 = arith.constant 0 : i32
    %c0_i32_0 = arith.constant 0 : i32
    return %arg0, %c0_i32 : i32, i32
  }
  func.func @transform_1(%arg0: i32) -> (i32, i32) {
    %c0_i32 = arith.constant 0 : i32
    %c0_i32_0 = arith.constant 0 : i32
    %c0_i32_1 = arith.constant 0 : i32
    return %c0_i32, %c0_i32_0 : i32, i32
  }
  func.func @transform_2(%arg0: i32) -> (i32, i32) {
    %c0_i32 = arith.constant 0 : i32
    %c0_i32_0 = arith.constant 0 : i32
    %c0_i32_1 = arith.constant 0 : i32
    return %c0_i32, %c0_i32_0 : i32, i32
  }
  func.func @transform_3(%arg0: i32) -> (i32, i32) {
    %c0_i32 = arith.constant 0 : i32
    %c0_i32_0 = arith.constant 0 : i32
    %c0_i32_1 = arith.constant 0 : i32
    return %c0_i32, %c0_i32_0 : i32, i32
  }
  func.func @transform_4(%arg0: i32) -> (i32, i32) {
    %c0_i32 = arith.constant 0 : i32
    %c0_i32_0 = arith.constant 0 : i32
    %c0_i32_1 = arith.constant 0 : i32
    return %c0_i32, %c0_i32_0 : i32, i32
  }
  func.func @transform_5(%arg0: i32) -> (i32, i32) {
    %c0_i32 = arith.constant 0 : i32
    %c0_i32_0 = arith.constant 0 : i32
    %c0_i32_1 = arith.constant 0 : i32
    return %c0_i32, %c0_i32_0 : i32, i32
  }
  func.func @transform_6(%arg0: i32) -> (i32, i32) {
    %c0_i32 = arith.constant 0 : i32
    %c0_i32_0 = arith.constant 0 : i32
    %c0_i32_1 = arith.constant 0 : i32
    return %c0_i32, %c0_i32_0 : i32, i32
  }
  func.func @transform_7(%arg0: i32) -> (i32, i32) {
    %c0_i32 = arith.constant 0 : i32
    %c0_i32_0 = arith.constant 0 : i32
    return %c0_i32, %arg0 : i32, i32
  }
}

</mosaic_0001>

<llo_original>
// kernel: tpu_custom_call.1
$region0: #{tpu_custom_call.1}
  #allocation0 [shape = 'u32[]', space=smem, size = 0x4, offset = 0x4, fixed_abs, tag = 'smem constant byte address 0x4 - core index']
  #allocation1 [shape = 'u32[144,128]{1,0:T(1,128)}', space=vmem, size = 0x12000, scoped, tag = 'internal scratch']
  #allocation2 [shape = 'f32[1,1]{1,0:T(1,128)S(6)}', space=smem, size = 0x200, scoped, tag = 'scoped memory for tpu_custom_call.1']
  %s0 = inlined_call_operand.vmem [shape: f32[8,16], index: 0, kind: input, shape index: {}]
  %s1 = inlined_call_operand.vmem [shape: bf16[128,16], index: 1, kind: input, shape index: {}]
  %s2 = inlined_call_operand.vmem [shape: f32[128,1], index: 2, kind: input, shape index: {}]
  %s3 = inlined_call_operand.vmem [shape: bf16[128,128], index: 3, kind: input, shape index: {}]
  %s4 = inlined_call_operand.vmem [shape: f32[128,1], index: 4, kind: input, shape index: {}]
  %s5 = inlined_call_operand.vmem [shape: f32[128,1], index: 5, kind: input, shape index: {}]
  %s6 = inlined_call_operand.<no memory space> [shape: f32[1,1], index: 6, kind: input, shape index: {}]
  %s7 = inlined_call_operand.hbm [shape: f32[1,8], index: 7, kind: output, shape index: {}]
  %s8 = sld [smem:[#allocation0]]
  $region38: #{tpu_custom_call.1} parent=0
    _
  %s10 = ssub.s32 1, %s8
  %s11 = scalar_select 0, %s10, %s8
  %12 = sst [smem:[#allocation2]] %s6
  $region1: #{tpu_custom_call.1} parent=0
    #allocation3 [shape = 'u8[512]{0}', space=vmem, size = 0x400, scoped, tag = 'output window, operand 0, single buffered']
    #allocation4 [shape = 's32[1]{0}', space=sflag, size = 0x4, scoped, tag = 'scoped memory for tpu_custom_call.1']
    %13 = vsyncpa [#allocation4], 0
    // Predicated region
    $region2: #{tpu_custom_call.1} parent=1 // pred_check
      _
    $region3: #{tpu_custom_call.1} parent=1 // pred_check_branch
      %15 = sbr.rel (0) target = $region5
    $region4: #{tpu_custom_call.1} parent=1 // pred_region
      _
    $region5: #{tpu_custom_call.1} parent=1 // pred_fallthru
      _
    // Predicated region
    $region6: #{tpu_custom_call.1} parent=1 // pred_check
      _
    $region7: #{tpu_custom_call.1} parent=1 // pred_check_branch
      %17 = sbr.rel (0) target = $region9
    $region8: #{tpu_custom_call.1} parent=1 // pred_region
      _
    $region9: #{tpu_custom_call.1} parent=1 // pred_fallthru
      _
    // Predicated region
    $region10: #{tpu_custom_call.1} parent=1 // pred_check
      _
    $region11: #{tpu_custom_call.1} parent=1 // pred_check_branch
      %19 = sbr.rel (0) target = $region13
    $region12: #{tpu_custom_call.1} parent=1 // pred_region
      _
    $region13: #{tpu_custom_call.1} parent=1 // pred_fallthru
      _
    // Predicated region
    $region14: #{tpu_custom_call.1} parent=1 // pred_check
      _
    $region15: #{tpu_custom_call.1} parent=1 // pred_check_branch
      %21 = sbr.rel (0) target = $region17
    $region16: #{tpu_custom_call.1} parent=1 // pred_region
      _
    $region17: #{tpu_custom_call.1} parent=1 // pred_fallthru
      _
    // Predicated region
    $region18: #{tpu_custom_call.1} parent=1 // pred_check
      _
    $region19: #{tpu_custom_call.1} parent=1 // pred_check_branch
      %23 = sbr.rel (0) target = $region21
    $region20: #{tpu_custom_call.1} parent=1 // pred_region
      _
    $region21: #{tpu_custom_call.1} parent=1 // pred_fallthru
      _
    // Predicated region
    $region22: #{tpu_custom_call.1} parent=1 // pred_check
      _
    $region23: #{tpu_custom_call.1} parent=1 // pred_check_branch
      %25 = sbr.rel (0) target = $region25
    $region24: #{tpu_custom_call.1} parent=1 // pred_region
      _
    $region25: #{tpu_custom_call.1} parent=1 // pred_fallthru
      _
    // Predicated region
    $region26: #{tpu_custom_call.1} parent=1 // pred_check
      _
    $region27: #{tpu_custom_call.1} parent=1 // pred_check_branch
      %27 = sbr.rel (0) target = $region29
    $region28: #{tpu_custom_call.1} parent=1 // pred_region
      _
    $region29: #{tpu_custom_call.1} parent=1 // pred_fallthru
      _
    %v29 = vld [vmem:[%s0] sm:$0xff]
    %v30 = vpack.c.bf16 %v29, %v29
    %v31 = vld [vmem:[%s1] sm:$0xf]
    %v32 = vld [vmem:[%s1 + $0x4] sm:$0xf]
    %v33 = vld [vmem:[%s1 + $0x8] sm:$0xf]
    %v34 = vld [vmem:[%s1 + $0xc] sm:$0xf]
    %v35 = vld [vmem:[%s1 + $0x10] sm:$0xf]
    %v36 = vld [vmem:[%s1 + $0x14] sm:$0xf]
    %v37 = vld [vmem:[%s1 + $0x18] sm:$0xf]
    %v38 = vld [vmem:[%s1 + $0x1c] sm:$0xf]
    %v39 = vld [vmem:[%s1 + $0x20] sm:$0xf]
    %v40 = vld [vmem:[%s1 + $0x24] sm:$0xf]
    %v41 = vld [vmem:[%s1 + $0x28] sm:$0xf]
    %v42 = vld [vmem:[%s1 + $0x2c] sm:$0xf]
    %v43 = vld [vmem:[%s1 + $0x30] sm:$0xf]
    %v44 = vld [vmem:[%s1 + $0x34] sm:$0xf]
    %v45 = vld [vmem:[%s1 + $0x38] sm:$0xf]
    %v46 = vld [vmem:[%s1 + $0x3c] sm:$0xf]
    %v47 = vld [vmem:[%s2] sm:$0xff]
    %v48 = vld [vmem:[%s2 + $0x8] sm:$0xff]
    %v49 = vld [vmem:[%s2 + $0x10] sm:$0xff]
    %v50 = vld [vmem:[%s2 + $0x18] sm:$0xff]
    %v51 = vld [vmem:[%s2 + $0x20] sm:$0xff]
    %v52 = vld [vmem:[%s2 + $0x28] sm:$0xff]
    %v53 = vld [vmem:[%s2 + $0x30] sm:$0xff]
    %v54 = vld [vmem:[%s2 + $0x38] sm:$0xff]
    %v55 = vld [vmem:[%s2 + $0x40] sm:$0xff]
    %v56 = vld [vmem:[%s2 + $0x48] sm:$0xff]
    %v57 = vld [vmem:[%s2 + $0x50] sm:$0xff]
    %v58 = vld [vmem:[%s2 + $0x58] sm:$0xff]
    %v59 = vld [vmem:[%s2 + $0x60] sm:$0xff]
    %v60 = vld [vmem:[%s2 + $0x68] sm:$0xff]
    %v61 = vld [vmem:[%s2 + $0x70] sm:$0xff]
    %v62 = vld [vmem:[%s2 + $0x78] sm:$0xff]
    %64 = vset.pattern.permute.xlu0 0
    %65 = vperm.xlu0 %64, %v47
    %v66 = vpop.permute.xlu0 %65
    %69 = vset.pattern.permute.xlu0 0
    %70 = vperm.xlu0 %69, %v48
    %v71 = vpop.permute.xlu0 %70
    %74 = vset.pattern.permute.xlu0 0
    %75 = vperm.xlu0 %74, %v49
    %v76 = vpop.permute.xlu0 %75
    %79 = vset.pattern.permute.xlu0 0
    %80 = vperm.xlu0 %79, %v50
    %v81 = vpop.permute.xlu0 %80
    %84 = vset.pattern.permute.xlu0 0
    %85 = vperm.xlu0 %84, %v51
    %v86 = vpop.permute.xlu0 %85
    %89 = vset.pattern.permute.xlu0 0
    %90 = vperm.xlu0 %89, %v52
    %v91 = vpop.permute.xlu0 %90
    %94 = vset.pattern.permute.xlu0 0
    %95 = vperm.xlu0 %94, %v53
    %v96 = vpop.permute.xlu0 %95
    %99 = vset.pattern.permute.xlu0 0
    %100 = vperm.xlu0 %99, %v54
    %v101 = vpop.permute.xlu0 %100
    %104 = vset.pattern.permute.xlu0 0
    %105 = vperm.xlu0 %104, %v55
    %v106 = vpop.permute.xlu0 %105
    %109 = vset.pattern.permute.xlu0 0
    %110 = vperm.xlu0 %109, %v56
    %v111 = vpop.permute.xlu0 %110
    %114 = vset.pattern.permute.xlu0 0
    %115 = vperm.xlu0 %114, %v57
    %v116 = vpop.permute.xlu0 %115
    %119 = vset.pattern.permute.xlu0 0
    %120 = vperm.xlu0 %119, %v58
    %v121 = vpop.permute.xlu0 %120
    %124 = vset.pattern.permute.xlu0 0
    %125 = vperm.xlu0 %124, %v59
    %v126 = vpop.permute.xlu0 %125
    %129 = vset.pattern.permute.xlu0 0
    %130 = vperm.xlu0 %129, %v60
    %v131 = vpop.permute.xlu0 %130
    %134 = vset.pattern.permute.xlu0 0
    %135 = vperm.xlu0 %134, %v61
    %v136 = vpop.permute.xlu0 %135
    %139 = vset.pattern.permute.xlu0 0
    %140 = vperm.xlu0 %139, %v62
    %v141 = vpop.permute.xlu0 %140
    %v159 = vunpack.c.l.b16 %v31
    %v160 = vunpack.c.l.b16 %v32
    %v161 = vunpack.c.l.b16 %v33
    %v162 = vunpack.c.l.b16 %v34
    %v163 = vunpack.c.l.b16 %v35
    %v164 = vunpack.c.l.b16 %v36
    %v165 = vunpack.c.l.b16 %v37
    %v166 = vunpack.c.l.b16 %v38
    %v167 = vunpack.c.l.b16 %v39
    %v168 = vunpack.c.l.b16 %v40
    %v169 = vunpack.c.l.b16 %v41
    %v170 = vunpack.c.l.b16 %v42
    %v171 = vunpack.c.l.b16 %v43
    %v172 = vunpack.c.l.b16 %v44
    %v173 = vunpack.c.l.b16 %v45
    %v174 = vunpack.c.l.b16 %v46
    %v175 = vpack.c.b16 %v160, %v159
    %v176 = vpack.c.b16 %v162, %v161
    %v177 = vpack.c.b16 %v164, %v163
    %v178 = vpack.c.b16 %v166, %v165
    %v179 = vpack.c.b16 %v168, %v167
    %v180 = vpack.c.b16 %v170, %v169
    %v181 = vpack.c.b16 %v172, %v171
    %v182 = vpack.c.b16 %v174, %v173
    %vm183 = vcmask 130048
    %v185 = vsel %vm183, %v175, 0
    %v188 = vsel %vm183, %v176, 0
    %v191 = vsel %vm183, %v177, 0
    %v194 = vsel %vm183, %v178, 0
    %v197 = vsel %vm183, %v179, 0
    %v200 = vsel %vm183, %v180, 0
    %v203 = vsel %vm183, %v181, 0
    %v206 = vsel %vm183, %v182, 0
    %v209 = vsel %vm183, %v30, 0
    %211 = vmatprep.subr.bf16.mxu0 0
    %212 = vmatpush1.bf16.xpose.msra.mxu0 %v209
    %213 = vmatprep.subr.bf16.mxu0 0
    %214 = vmatpush1.bf16.xpose.msra.mxu0 0
    %215 = vmatprep.subr.bf16.mxu0 0
    %216 = vmatpush1.bf16.xpose.msra.mxu0 0
    %217 = vmatprep.subr.bf16.mxu0 0
    %218 = vmatpush1.bf16.xpose.msra.mxu0 0
    %219 = vmatprep.subr.bf16.mxu0 0
    %220 = vmatpush1.bf16.xpose.msra.mxu0 0
    %221 = vmatprep.subr.bf16.mxu0 0
    %222 = vmatpush1.bf16.xpose.msra.mxu0 0
    %223 = vmatprep.subr.bf16.mxu0 0
    %224 = vmatpush1.bf16.xpose.msra.mxu0 0
    %225 = vmatprep.subr.bf16.mxu0 0
    %226 = vmatpush1.bf16.xpose.msra.mxu0 0
    %227 = vmatprep.subr.bf16.mxu0 0
    %228 = vmatpush1.bf16.xpose.msra.mxu0 0
    %229 = vmatprep.subr.bf16.mxu0 0
    %230 = vmatpush1.bf16.xpose.msra.mxu0 0
    %231 = vmatprep.subr.bf16.mxu0 0
    %232 = vmatpush1.bf16.xpose.msra.mxu0 0
    %233 = vmatprep.subr.bf16.mxu0 0
    %234 = vmatpush1.bf16.xpose.msra.mxu0 0
    %235 = vmatprep.subr.bf16.mxu0 0
    %236 = vmatpush1.bf16.xpose.msra.mxu0 0
    %237 = vmatprep.subr.bf16.mxu0 0
    %238 = vmatpush1.bf16.xpose.msra.mxu0 0
    %239 = vmatprep.subr.bf16.mxu0 0
    %240 = vmatpush1.bf16.xpose.msra.mxu0 0
    %241 = vmatprep.subr.bf16.mxu0 0
    %242 = vmatpush1.bf16.xpose.msra.mxu0 0
    %243 = vmatprep.mubr.bf16.mxu0 0
    %244 = vmatmul.mubr.bf16.gmra.mrb[0].mxu0 %v185
    %v245 = vpop.f32.mrb[0].mxu0
    %v246 = vadd.f32 %v66, %v245
    %v247 = vpop.f32.mrb[0].mxu0
    %v248 = vpop.f32.mrb[0].mxu0
    %v249 = vadd.f32 %v71, %v248
    %v250 = vpop.f32.mrb[0].mxu0
    %251 = vmatprep.mubr.bf16.mxu0 0
    %252 = vmatmul.mubr.bf16.gmra.mrb[0].mxu0 %v188
    %v253 = vpop.f32.mrb[0].mxu0
    %v254 = vadd.f32 %v76, %v253
    %v255 = vpop.f32.mrb[0].mxu0
    %v256 = vpop.f32.mrb[0].mxu0
    %v257 = vadd.f32 %v81, %v256
    %v258 = vpop.f32.mrb[0].mxu0
    %259 = vmatprep.mubr.bf16.mxu0 0
    %260 = vmatmul.mubr.bf16.gmra.mrb[0].mxu0 %v191
    %v261 = vpop.f32.mrb[0].mxu0
    %v262 = vadd.f32 %v86, %v261
    %v263 = vpop.f32.mrb[0].mxu0
    %v264 = vpop.f32.mrb[0].mxu0
    %v265 = vadd.f32 %v91, %v264
    %v266 = vpop.f32.mrb[0].mxu0
    %267 = vmatprep.mubr.bf16.mxu0 0
    %268 = vmatmul.mubr.bf16.gmra.mrb[0].mxu0 %v194
    %v269 = vpop.f32.mrb[0].mxu0
    %v270 = vadd.f32 %v96, %v269
    %v271 = vpop.f32.mrb[0].mxu0
    %v272 = vpop.f32.mrb[0].mxu0
    %v273 = vadd.f32 %v101, %v272
    %v274 = vpop.f32.mrb[0].mxu0
    %275 = vmatprep.mubr.bf16.mxu0 0
    %276 = vmatmul.mubr.bf16.gmra.mrb[0].mxu0 %v197
    %v277 = vpop.f32.mrb[0].mxu0
    %v278 = vadd.f32 %v106, %v277
    %v279 = vpop.f32.mrb[0].mxu0
    %v280 = vpop.f32.mrb[0].mxu0
    %v281 = vadd.f32 %v111, %v280
    %v282 = vpop.f32.mrb[0].mxu0
    %283 = vmatprep.mubr.bf16.mxu0 0
    %284 = vmatmul.mubr.bf16.gmra.mrb[0].mxu0 %v200
    %v285 = vpop.f32.mrb[0].mxu0
    %v286 = vadd.f32 %v116, %v285
    %v287 = vpop.f32.mrb[0].mxu0
    %v288 = vpop.f32.mrb[0].mxu0
    %v289 = vadd.f32 %v121, %v288
    %v290 = vpop.f32.mrb[0].mxu0
    %291 = vmatprep.mubr.bf16.mxu0 0
    %292 = vmatmul.mubr.bf16.gmra.mrb[0].mxu0 %v203
    %v293 = vpop.f32.mrb[0].mxu0
    %v294 = vadd.f32 %v126, %v293
    %v295 = vpop.f32.mrb[0].mxu0
    %v296 = vpop.f32.mrb[0].mxu0
    %v297 = vadd.f32 %v131, %v296
    %v298 = vpop.f32.mrb[0].mxu0
    %299 = vmatprep.mubr.bf16.mxu0 0
    %300 = vmatmul.mubr.bf16.gmra.mrb[0].mxu0 %v206
    %v301 = vpop.f32.mrb[0].mxu0
    %v302 = vadd.f32 %v136, %v301
    %v303 = vpop.f32.mrb[0].mxu0
    %v304 = vpop.f32.mrb[0].mxu0
    %v305 = vadd.f32 %v141, %v304
    %v306 = vpop.f32.mrb[0].mxu0
    %307 = vdwg.mxu0
    %v308 = vmax.f32 %v246, 0.0
    %v309 = vmax.f32 %v249, 0.0
    %v310 = vmax.f32 %v254, 0.0
    %v311 = vmax.f32 %v257, 0.0
    %v312 = vmax.f32 %v262, 0.0
    %v313 = vmax.f32 %v265, 0.0
    %v314 = vmax.f32 %v270, 0.0
    %v315 = vmax.f32 %v273, 0.0
    %v316 = vmax.f32 %v278, 0.0
    %v317 = vmax.f32 %v281, 0.0
    %v318 = vmax.f32 %v286, 0.0
    %v319 = vmax.f32 %v289, 0.0
    %v320 = vmax.f32 %v294, 0.0
    %v321 = vmax.f32 %v297, 0.0
    %v322 = vmax.f32 %v302, 0.0
    %v323 = vmax.f32 %v305, 0.0
    %v324 = vpack.c.bf16 %v309, %v308
    %v325 = vpack.c.bf16 %v311, %v310
    %v326 = vpack.c.bf16 %v313, %v312
    %v327 = vpack.c.bf16 %v315, %v314
    %v328 = vpack.c.bf16 %v317, %v316
    %v329 = vpack.c.bf16 %v319, %v318
    %v330 = vpack.c.bf16 %v321, %v320
    %v331 = vpack.c.bf16 %v323, %v322
    %v332 = vld [vmem:[%s3] sm:$0xf]
    %v333 = vld [vmem:[%s3 + $0x4] sm:$0xf]
    %v334 = vld [vmem:[%s3 + $0x8] sm:$0xf]
    %v335 = vld [vmem:[%s3 + $0xc] sm:$0xf]
    %v336 = vld [vmem:[%s3 + $0x10] sm:$0xf]
    %v337 = vld [vmem:[%s3 + $0x14] sm:$0xf]
    %v338 = vld [vmem:[%s3 + $0x18] sm:$0xf]
    %v339 = vld [vmem:[%s3 + $0x1c] sm:$0xf]
    %v340 = vld [vmem:[%s3 + $0x20] sm:$0xf]
    %v341 = vld [vmem:[%s3 + $0x24] sm:$0xf]
    %v342 = vld [vmem:[%s3 + $0x28] sm:$0xf]
    %v343 = vld [vmem:[%s3 + $0x2c] sm:$0xf]
    %v344 = vld [vmem:[%s3 + $0x30] sm:$0xf]
    %v345 = vld [vmem:[%s3 + $0x34] sm:$0xf]
    %v346 = vld [vmem:[%s3 + $0x38] sm:$0xf]
    %v347 = vld [vmem:[%s3 + $0x3c] sm:$0xf]
    %v348 = vld [vmem:[%s4] sm:$0xff]
    %v349 = vld [vmem:[%s4 + $0x8] sm:$0xff]
    %v350 = vld [vmem:[%s4 + $0x10] sm:$0xff]
    %v351 = vld [vmem:[%s4 + $0x18] sm:$0xff]
    %v352 = vld [vmem:[%s4 + $0x20] sm:$0xff]
    %v353 = vld [vmem:[%s4 + $0x28] sm:$0xff]
    %v354 = vld [vmem:[%s4 + $0x30] sm:$0xff]
    %v355 = vld [vmem:[%s4 + $0x38] sm:$0xff]
    %v356 = vld [vmem:[%s4 + $0x40] sm:$0xff]
    %v357 = vld [vmem:[%s4 + $0x48] sm:$0xff]
    %v358 = vld [vmem:[%s4 + $0x50] sm:$0xff]
    %v359 = vld [vmem:[%s4 + $0x58] sm:$0xff]
    %v360 = vld [vmem:[%s4 + $0x60] sm:$0xff]
    %v361 = vld [vmem:[%s4 + $0x68] sm:$0xff]
    %v362 = vld [vmem:[%s4 + $0x70] sm:$0xff]
    %v363 = vld [vmem:[%s4 + $0x78] sm:$0xff]
    %365 = vset.pattern.permute.xlu0 0
    %366 = vperm.xlu0 %365, %v348
    %v367 = vpop.permute.xlu0 %366
    %370 = vset.pattern.permute.xlu0 0
    %371 = vperm.xlu0 %370, %v349
    %v372 = vpop.permute.xlu0 %371
    %375 = vset.pattern.permute.xlu0 0
    %376 = vperm.xlu0 %375, %v350
    %v377 = vpop.permute.xlu0 %376
    %380 = vset.pattern.permute.xlu0 0
    %381 = vperm.xlu0 %380, %v351
    %v382 = vpop.permute.xlu0 %381
    %385 = vset.pattern.permute.xlu0 0
    %386 = vperm.xlu0 %385, %v352
    %v387 = vpop.permute.xlu0 %386
    %390 = vset.pattern.permute.xlu0 0
    %391 = vperm.xlu0 %390, %v353
    %v392 = vpop.permute.xlu0 %391
    %395 = vset.pattern.permute.xlu0 0
    %396 = vperm.xlu0 %395, %v354
    %v397 = vpop.permute.xlu0 %396
    %400 = vset.pattern.permute.xlu0 0
    %401 = vperm.xlu0 %400, %v355
    %v402 = vpop.permute.xlu0 %401
    %405 = vset.pattern.permute.xlu0 0
    %406 = vperm.xlu0 %405, %v356
    %v407 = vpop.permute.xlu0 %406
    %410 = vset.pattern.permute.xlu0 0
    %411 = vperm.xlu0 %410, %v357
    %v412 = vpop.permute.xlu0 %411
    %415 = vset.pattern.permute.xlu0 0
    %416 = vperm.xlu0 %415, %v358
    %v417 = vpop.permute.xlu0 %416
    %420 = vset.pattern.permute.xlu0 0
    %421 = vperm.xlu0 %420, %v359
    %v422 = vpop.permute.xlu0 %421
    %425 = vset.pattern.permute.xlu0 0
    %426 = vperm.xlu0 %425, %v360
    %v427 = vpop.permute.xlu0 %426
    %430 = vset.pattern.permute.xlu0 0
    %431 = vperm.xlu0 %430, %v361
    %v432 = vpop.permute.xlu0 %431
    %435 = vset.pattern.permute.xlu0 0
    %436 = vperm.xlu0 %435, %v362
    %v437 = vpop.permute.xlu0 %436
    %440 = vset.pattern.permute.xlu0 0
    %441 = vperm.xlu0 %440, %v363
    %v442 = vpop.permute.xlu0 %441
    %v460 = vunpack.c.l.b16 %v332
    %v461 = vunpack.c.l.b16 %v333
    %v462 = vunpack.c.l.b16 %v334
    %v463 = vunpack.c.l.b16 %v335
    %v464 = vunpack.c.l.b16 %v336
    %v465 = vunpack.c.l.b16 %v337
    %v466 = vunpack.c.l.b16 %v338
    %v467 = vunpack.c.l.b16 %v339
    %v468 = vunpack.c.l.b16 %v340
    %v469 = vunpack.c.l.b16 %v341
    %v470 = vunpack.c.l.b16 %v342
    %v471 = vunpack.c.l.b16 %v343
    %v472 = vunpack.c.l.b16 %v344
    %v473 = vunpack.c.l.b16 %v345
    %v474 = vunpack.c.l.b16 %v346
    %v475 = vunpack.c.l.b16 %v347
    %v476 = vpack.c.b16 %v461, %v460
    %v477 = vpack.c.b16 %v463, %v462
    %v478 = vpack.c.b16 %v465, %v464
    %v479 = vpack.c.b16 %v467, %v466
    %v480 = vpack.c.b16 %v469, %v468
    %v481 = vpack.c.b16 %v471, %v470
    %v482 = vpack.c.b16 %v473, %v472
    %v483 = vpack.c.b16 %v475, %v474
    %492 = vmatprep.subr.bf16.mxu0 0
    %493 = vmatpush1.bf16.msra.mxu0 %v324
    %494 = vmatprep.subr.bf16.mxu0 0
    %495 = vmatpush1.bf16.msra.mxu0 %v325
    %496 = vmatprep.subr.bf16.mxu0 0
    %497 = vmatpush1.bf16.msra.mxu0 %v326
    %498 = vmatprep.subr.bf16.mxu0 0
    %499 = vmatpush1.bf16.msra.mxu0 %v327
    %500 = vmatprep.subr.bf16.mxu0 0
    %501 = vmatpush1.bf16.msra.mxu0 %v328
    %502 = vmatprep.subr.bf16.mxu0 0
    %503 = vmatpush1.bf16.msra.mxu0 %v329
    %504 = vmatprep.subr.bf16.mxu0 0
    %505 = vmatpush1.bf16.msra.mxu0 %v330
    %506 = vmatprep.subr.bf16.mxu0 0
    %507 = vmatpush1.bf16.msra.mxu0 %v331
    %508 = vmatprep.subr.bf16.mxu0 0
    %509 = vmatpush1.bf16.msra.mxu0 0
    %510 = vmatprep.subr.bf16.mxu0 0
    %511 = vmatpush1.bf16.msra.mxu0 0
    %512 = vmatprep.subr.bf16.mxu0 0
    %513 = vmatpush1.bf16.msra.mxu0 0
    %514 = vmatprep.subr.bf16.mxu0 0
    %515 = vmatpush1.bf16.msra.mxu0 0
    %516 = vmatprep.subr.bf16.mxu0 0
    %517 = vmatpush1.bf16.msra.mxu0 0
    %518 = vmatprep.subr.bf16.mxu0 0
    %519 = vmatpush1.bf16.msra.mxu0 0
    %520 = vmatprep.subr.bf16.mxu0 0
    %521 = vmatpush1.bf16.msra.mxu0 0
    %522 = vmatprep.subr.bf16.mxu0 0
    %523 = vmatpush1.bf16.msra.mxu0 0
    %524 = vmatprep.mubr.bf16.mxu0 0
    %525 = vmatmul.mubr.bf16.gmra.mrb[0].mxu0 %v476
    %v526 = vpop.f32.mrb[0].mxu0
    %v527 = vadd.f32 %v367, %v526
    %v528 = vpop.f32.mrb[0].mxu0
    %v529 = vpop.f32.mrb[0].mxu0
    %v530 = vadd.f32 %v372, %v529
    %v531 = vpop.f32.mrb[0].mxu0
    %532 = vmatprep.mubr.bf16.mxu0 0
    %533 = vmatmul.mubr.bf16.gmra.mrb[0].mxu0 %v477
    %v534 = vpop.f32.mrb[0].mxu0
    %v535 = vadd.f32 %v377, %v534
    %v536 = vpop.f32.mrb[0].mxu0
    %v537 = vpop.f32.mrb[0].mxu0
    %v538 = vadd.f32 %v382, %v537
    %v539 = vpop.f32.mrb[0].mxu0
    %540 = vmatprep.mubr.bf16.mxu0 0
    %541 = vmatmul.mubr.bf16.gmra.mrb[0].mxu0 %v478
    %v542 = vpop.f32.mrb[0].mxu0
    %v543 = vadd.f32 %v387, %v542
    %v544 = vpop.f32.mrb[0].mxu0
    %v545 = vpop.f32.mrb[0].mxu0
    %v546 = vadd.f32 %v392, %v545
    %v547 = vpop.f32.mrb[0].mxu0
    %548 = vmatprep.mubr.bf16.mxu0 0
    %549 = vmatmul.mubr.bf16.gmra.mrb[0].mxu0 %v479
    %v550 = vpop.f32.mrb[0].mxu0
    %v551 = vadd.f32 %v397, %v550
    %v552 = vpop.f32.mrb[0].mxu0
    %v553 = vpop.f32.mrb[0].mxu0
    %v554 = vadd.f32 %v402, %v553
    %v555 = vpop.f32.mrb[0].mxu0
    %556 = vmatprep.mubr.bf16.mxu0 0
    %557 = vmatmul.mubr.bf16.gmra.mrb[0].mxu0 %v480
    %v558 = vpop.f32.mrb[0].mxu0
    %v559 = vadd.f32 %v407, %v558
    %v560 = vpop.f32.mrb[0].mxu0
    %v561 = vpop.f32.mrb[0].mxu0
    %v562 = vadd.f32 %v412, %v561
    %v563 = vpop.f32.mrb[0].mxu0
    %564 = vmatprep.mubr.bf16.mxu0 0
    %565 = vmatmul.mubr.bf16.gmra.mrb[0].mxu0 %v481
    %v566 = vpop.f32.mrb[0].mxu0
    %v567 = vadd.f32 %v417, %v566
    %v568 = vpop.f32.mrb[0].mxu0
    %v569 = vpop.f32.mrb[0].mxu0
    %v570 = vadd.f32 %v422, %v569
    %v571 = vpop.f32.mrb[0].mxu0
    %572 = vmatprep.mubr.bf16.mxu0 0
    %573 = vmatmul.mubr.bf16.gmra.mrb[0].mxu0 %v482
    %v574 = vpop.f32.mrb[0].mxu0
    %v575 = vadd.f32 %v427, %v574
    %v576 = vpop.f32.mrb[0].mxu0
    %v577 = vpop.f32.mrb[0].mxu0
    %v578 = vadd.f32 %v432, %v577
    %v579 = vpop.f32.mrb[0].mxu0
    %580 = vmatprep.mubr.bf16.mxu0 0
    %581 = vmatmul.mubr.bf16.gmra.mrb[0].mxu0 %v483
    %v582 = vpop.f32.mrb[0].mxu0
    %v583 = vadd.f32 %v437, %v582
    %v584 = vpop.f32.mrb[0].mxu0
    %v585 = vpop.f32.mrb[0].mxu0
    %v586 = vadd.f32 %v442, %v585
    %v587 = vpop.f32.mrb[0].mxu0
    %588 = vdwg.mxu0
    %v589 = vmax.f32 %v527, 0.0
    %v590 = vmax.f32 %v530, 0.0
    %v591 = vmax.f32 %v535, 0.0
    %v592 = vmax.f32 %v538, 0.0
    %v593 = vmax.f32 %v543, 0.0
    %v594 = vmax.f32 %v546, 0.0
    %v595 = vmax.f32 %v551, 0.0
    %v596 = vmax.f32 %v554, 0.0
    %v597 = vmax.f32 %v559, 0.0
    %v598 = vmax.f32 %v562, 0.0
    %v599 = vmax.f32 %v567, 0.0
    %v600 = vmax.f32 %v570, 0.0
    %v601 = vmax.f32 %v575, 0.0
    %v602 = vmax.f32 %v578, 0.0
    %v603 = vmax.f32 %v583, 0.0
    %v604 = vmax.f32 %v586, 0.0
    %v605 = vld [vmem:[%s5] sm:$0xff]
    %v606 = vld [vmem:[%s5 + $0x8] sm:$0xff]
    %v607 = vld [vmem:[%s5 + $0x10] sm:$0xff]
    %v608 = vld [vmem:[%s5 + $0x18] sm:$0xff]
    %v609 = vld [vmem:[%s5 + $0x20] sm:$0xff]
    %v610 = vld [vmem:[%s5 + $0x28] sm:$0xff]
    %v611 = vld [vmem:[%s5 + $0x30] sm:$0xff]
    %v612 = vld [vmem:[%s5 + $0x38] sm:$0xff]
    %v613 = vld [vmem:[%s5 + $0x40] sm:$0xff]
    %v614 = vld [vmem:[%s5 + $0x48] sm:$0xff]
    %v615 = vld [vmem:[%s5 + $0x50] sm:$0xff]
    %v616 = vld [vmem:[%s5 + $0x58] sm:$0xff]
    %v617 = vld [vmem:[%s5 + $0x60] sm:$0xff]
    %v618 = vld [vmem:[%s5 + $0x68] sm:$0xff]
    %v619 = vld [vmem:[%s5 + $0x70] sm:$0xff]
    %v620 = vld [vmem:[%s5 + $0x78] sm:$0xff]
    %622 = vset.pattern.permute.xlu0 0
    %623 = vperm.xlu0 %622, %v605
    %v624 = vpop.permute.xlu0 %623
    %627 = vset.pattern.permute.xlu0 0
    %628 = vperm.xlu0 %627, %v606
    %v629 = vpop.permute.xlu0 %628
    %632 = vset.pattern.permute.xlu0 0
    %633 = vperm.xlu0 %632, %v607
    %v634 = vpop.permute.xlu0 %633
    %637 = vset.pattern.permute.xlu0 0
    %638 = vperm.xlu0 %637, %v608
    %v639 = vpop.permute.xlu0 %638
    %642 = vset.pattern.permute.xlu0 0
    %643 = vperm.xlu0 %642, %v609
    %v644 = vpop.permute.xlu0 %643
    %647 = vset.pattern.permute.xlu0 0
    %648 = vperm.xlu0 %647, %v610
    %v649 = vpop.permute.xlu0 %648
    %652 = vset.pattern.permute.xlu0 0
    %653 = vperm.xlu0 %652, %v611
    %v654 = vpop.permute.xlu0 %653
    %657 = vset.pattern.permute.xlu0 0
    %658 = vperm.xlu0 %657, %v612
    %v659 = vpop.permute.xlu0 %658
    %662 = vset.pattern.permute.xlu0 0
    %663 = vperm.xlu0 %662, %v613
    %v664 = vpop.permute.xlu0 %663
    %667 = vset.pattern.permute.xlu0 0
    %668 = vperm.xlu0 %667, %v614
    %v669 = vpop.permute.xlu0 %668
    %672 = vset.pattern.permute.xlu0 0
    %673 = vperm.xlu0 %672, %v615
    %v674 = vpop.permute.xlu0 %673
    %677 = vset.pattern.permute.xlu0 0
    %678 = vperm.xlu0 %677, %v616
    %v679 = vpop.permute.xlu0 %678
    %682 = vset.pattern.permute.xlu0 0
    %683 = vperm.xlu0 %682, %v617
    %v684 = vpop.permute.xlu0 %683
    %687 = vset.pattern.permute.xlu0 0
    %688 = vperm.xlu0 %687, %v618
    %v689 = vpop.permute.xlu0 %688
    %692 = vset.pattern.permute.xlu0 0
    %693 = vperm.xlu0 %692, %v619
    %v694 = vpop.permute.xlu0 %693
    %697 = vset.pattern.permute.xlu0 0
    %698 = vperm.xlu0 %697, %v620
    %v699 = vpop.permute.xlu0 %698
    %v701 = vmul.f32 %v589, %v624
    %v702 = vmul.f32 %v590, %v629
    %v703 = vmul.f32 %v591, %v634
    %v704 = vmul.f32 %v592, %v639
    %v705 = vmul.f32 %v593, %v644
    %v706 = vmul.f32 %v594, %v649
    %v707 = vmul.f32 %v595, %v654
    %v708 = vmul.f32 %v596, %v659
    %v709 = vmul.f32 %v597, %v664
    %v710 = vmul.f32 %v598, %v669
    %v711 = vmul.f32 %v599, %v674
    %v712 = vmul.f32 %v600, %v679
    %v713 = vmul.f32 %v601, %v684
    %v714 = vmul.f32 %v602, %v689
    %v715 = vmul.f32 %v603, %v694
    %v716 = vmul.f32 %v604, %v699
    %vm717 = vcmask 64512
    %v718 = vsel %vm717, %v701, 0.0
    %v719 = vsel %vm717, %v702, 0.0
    %v720 = vadd.f32 %v718, %v719
    %v721 = vsel %vm717, %v703, 0.0
    %v722 = vadd.f32 %v720, %v721
    %v723 = vsel %vm717, %v704, 0.0
    %v724 = vadd.f32 %v722, %v723
    %v725 = vsel %vm717, %v705, 0.0
    %v726 = vadd.f32 %v724, %v725
    %v727 = vsel %vm717, %v706, 0.0
    %v728 = vadd.f32 %v726, %v727
    %v729 = vsel %vm717, %v707, 0.0
    %v730 = vadd.f32 %v728, %v729
    %v731 = vsel %vm717, %v708, 0.0
    %v732 = vadd.f32 %v730, %v731
    %v733 = vsel %vm717, %v709, 0.0
    %v734 = vadd.f32 %v732, %v733
    %v735 = vsel %vm717, %v710, 0.0
    %v736 = vadd.f32 %v734, %v735
    %v737 = vsel %vm717, %v711, 0.0
    %v738 = vadd.f32 %v736, %v737
    %v739 = vsel %vm717, %v712, 0.0
    %v740 = vadd.f32 %v738, %v739
    %v741 = vsel %vm717, %v713, 0.0
    %v742 = vadd.f32 %v740, %v741
    %v743 = vsel %vm717, %v714, 0.0
    %v744 = vadd.f32 %v742, %v743
    %v745 = vsel %vm717, %v715, 0.0
    %v746 = vadd.f32 %v744, %v745
    %v747 = vsel %vm717, %v716, 0.0
    %v748 = vadd.f32 %v746, %v747
    %v749 = vrot.slane %v748, 4
    %v750 = vadd.f32 %v748, %v749
    %v751 = vrot.slane %v750, 2
    %v752 = vadd.f32 %v750, %v751
    %v753 = vrot.slane %v752, 1
    %v754 = vadd.f32 %v752, %v753
    %s755 = sld [smem:[#allocation2]]
    %v756 = vstv %s755
    %v757 = vadd.f32 %v754, %v756
    %vm758 = vcmask 57344
    %759 = vst.msk [vmem:[#allocation3] sm:$0x1] %vm758, %v757
    // Predicated region
    $region30: #{tpu_custom_call.1} parent=1 // pred_check
      _
    $region31: #{tpu_custom_call.1} parent=1 // pred_check_branch
      %761 = sbr.rel (0) target = $region33
    $region32: #{tpu_custom_call.1} parent=1 // pred_region
      %s763 = ssub.s32 16, 16
      %764 = vsyncadd [#allocation4], %s763
      %s766 = sshll.u32 [#allocation3], 4
      %s767 = int_to_ptr.vmem [resolvable:$true] %s766
      %769 = dma.vmem_to_hbm [thread:$0]  %s767, 16, %s7, [#allocation4]
    $region33: #{tpu_custom_call.1} parent=1 // pred_fallthru
      _
    // Predicated region
    $region34: #{tpu_custom_call.1} parent=1 // pred_check
      _
    $region35: #{tpu_custom_call.1} parent=1 // pred_check_branch
      %771 = sbr.rel (0) target = $region37
    $region36: #{tpu_custom_call.1} parent=1 // pred_region
      %772 = dma.done [#allocation4], 16
    $region37: #{tpu_custom_call.1} parent=1 // pred_fallthru
      _
    %773 = vsyncpa [#allocation4], 1

</llo_original>
